<compile_context>
chip_gen: v7x
topology: tpu7x:2x2x1
jax: 0.10.0
libtpu: 0.0.40
codegen_flags: <defaults>
</compile_context>

<pallas_src>
import functools

import jax
import jax.numpy as jnp
from jax.experimental import pallas as pl
from jax.experimental.pallas import tpu as pltpu


def _round_up(x, m):
    return ((x + m - 1) // m) * m


def _vmem_capacity_bytes():
    """Physical per-core VMEM capacity; conservative fallback if the query fails."""
    try:
        info = pltpu.get_tpu_info()
        cap = int(getattr(info, "vmem_capacity_bytes", 0))
        if cap > 0:
            return cap
    except Exception:
        pass
    return 64 << 20  # v7x-sized conservative fallback


def linear_kernel(seq_ref, wt_ref, fts_ref, *, compute_dtype):
    """seq_fts = seq @ W^T (nn.Linear, bias=False), f32 accumulation.

    seq_ref: (1, TM, D_in)        VMEM (input dtype, cast in-kernel)
    wt_ref : (D_in, D_out_pad)    VMEM (compute dtype, zero-padded columns)
    fts_ref: (1, TM, D_out_pad)   VMEM (fts dtype == compute dtype)
    """
    x = seq_ref[0].astype(compute_dtype)
    fts = jnp.dot(x, wt_ref[...], preferred_element_type=jnp.float32)
    fts_ref[0] = fts.astype(fts_ref.dtype)


def propagate_kernel(alpha_ref, adj_ref, fts_ref, bias_ref, out_ref, *, compute_dtype):
    """out = PReLU(adj_tile @ seq_fts + bias), f32 accumulation + f32 epilogue.

    alpha_ref: (1, 1)               SMEM (PReLU slope)
    adj_ref  : (1, TM, N)           VMEM (input dtype, cast in-kernel)
    fts_ref  : (1, N, D_out_pad)    VMEM (compute dtype)
    bias_ref : (1, D_out_pad)       VMEM (f32)
    out_ref  : (1, TM, D_out_pad)   VMEM
    """
    a = adj_ref[0].astype(compute_dtype)
    out = jnp.dot(a, fts_ref[0], preferred_element_type=jnp.float32)
    out = out + bias_ref[...].astype(jnp.float32)
    alpha = alpha_ref[0, 0]
    out_ref[0] = jnp.where(out >= 0, out, alpha * out).astype(out_ref.dtype)


@functools.partial(jax.jit, static_argnames=("tm_target", "compute_dtype"))
def gcn_forward(seq, adj, weight, bias, alpha, *, tm_target=512,
                compute_dtype=jnp.bfloat16):
    """seq: (B, N, D_in), adj: (B, N, N), weight: (D_out, D_in) (torch Linear layout),
    bias: (D_out,), alpha: scalar PReLU slope.

    compute_dtype: dtype of the MXU inputs (adj/seq/seq_fts are cast to it; the
    accumulation and bias+PReLU epilogue stay f32).  Default bf16; pass
    jnp.float32 for strict f32 numerics."""
    B, N, D_in = seq.shape
    D_out = weight.shape[0]
    out_dtype = seq.dtype
    cdt = jnp.dtype(compute_dtype if compute_dtype is not None else jnp.bfloat16)
    fts_dtype = cdt

    d_out_pad = _round_up(D_out, 128)  # lane-dense MXU N-dim and output store

    # ---- row-tile size: start big, shrink until the propagate kernel's ----
    # ---- double-buffered working set fits the chip's physical VMEM.   ----
    vmem_cap = _vmem_capacity_bytes()
    vmem_budget = int(vmem_cap * 0.85)
    adj_isz = jnp.dtype(adj.dtype).itemsize
    seq_isz = jnp.dtype(seq.dtype).itemsize
    fts_isz = jnp.dtype(fts_dtype).itemsize
    out_isz = jnp.dtype(out_dtype).itemsize
    cdt_isz = jnp.dtype(cdt).itemsize

    def prop_vmem(tm):
        return (2 * tm * N * adj_isz            # adj row tile (double buffered)
                + 2 * N * d_out_pad * fts_isz   # per-batch seq_fts block
                + 2 * d_out_pad * 4             # bias
                + 2 * tm * d_out_pad * out_isz)  # out tile

    tm = min(_round_up(tm_target, 8), N)        # tm == N (full dim) is always legal
    while tm > 128 and prop_vmem(tm) > vmem_budget:
        tm = _round_up(max(tm // 2, 128), 8)
    n_row_tiles = (N + tm - 1) // tm

    def lin_vmem(tm_):
        return (2 * tm_ * D_in * seq_isz
                + 2 * D_in * d_out_pad * cdt_isz
                + 2 * tm_ * d_out_pad * fts_isz)

    prop_limit = int(min(max(prop_vmem(tm) * 1.25 + (4 << 20), 16 << 20), vmem_cap))
    lin_limit = int(min(max(lin_vmem(tm) * 1.25 + (4 << 20), 16 << 20), vmem_cap))

    # ---- small parameter tensors (only these are padded / copied) ---------
    wt_p = jnp.zeros((D_in, d_out_pad), cdt).at[:, :D_out].set(weight.T.astype(cdt))
    bias_p = jnp.zeros((1, d_out_pad), jnp.float32).at[0, :D_out].set(
        bias.astype(jnp.float32))
    alpha2d = jnp.asarray(alpha, jnp.float32).reshape(1, 1)

    # ---- kernel 1: seq_fts = seq @ W^T  ------------------------------------
    fts = pl.pallas_call(
        functools.partial(linear_kernel, compute_dtype=cdt),
        out_shape=jax.ShapeDtypeStruct((B, N, d_out_pad), fts_dtype),
        grid_spec=pltpu.PrefetchScalarGridSpec(
            num_scalar_prefetch=0,
            grid=(B, n_row_tiles),
            in_specs=[
                pl.BlockSpec((1, tm, D_in), lambda b, t: (b, t, 0)),       # seq tile
                pl.BlockSpec((D_in, d_out_pad), lambda b, t: (0, 0)),      # W^T
            ],
            out_specs=pl.BlockSpec((1, tm, d_out_pad), lambda b, t: (b, t, 0)),
        ),
        compiler_params=pltpu.CompilerParams(
            dimension_semantics=("parallel", "parallel"),
            vmem_limit_bytes=lin_limit,
        ),
    )(seq, wt_p)

    # ---- kernel 2: out = PReLU(adj @ seq_fts + bias) -----------------------
    out_p = pl.pallas_call(
        functools.partial(propagate_kernel, compute_dtype=cdt),
        out_shape=jax.ShapeDtypeStruct((B, N, d_out_pad), out_dtype),
        grid_spec=pltpu.PrefetchScalarGridSpec(
            num_scalar_prefetch=0,
            grid=(B, n_row_tiles),
            in_specs=[
                pl.BlockSpec(memory_space=pltpu.MemorySpace.SMEM),          # alpha
                pl.BlockSpec((1, tm, N), lambda b, t: (b, t, 0)),           # adj tile
                pl.BlockSpec((1, N, d_out_pad), lambda b, t: (b, 0, 0)),    # seq_fts
                pl.BlockSpec((1, d_out_pad), lambda b, t: (0, 0)),          # bias
            ],
            out_specs=pl.BlockSpec((1, tm, d_out_pad), lambda b, t: (b, t, 0)),
        ),
        compiler_params=pltpu.CompilerParams(
            dimension_semantics=("parallel", "parallel"),
            vmem_limit_bytes=prop_limit,
        ),
    )(alpha2d, adj, fts, bias_p)

    if d_out_pad != D_out:
        return out_p[:, :, :D_out]
    return out_p


def _xavier_uniform(key, out_dim, in_dim):
    # torch.nn.init.xavier_uniform_ for a (out_dim, in_dim) Linear weight
    bound = (6.0 / (in_dim + out_dim)) ** 0.5
    return jax.random.uniform(key, (out_dim, in_dim), jnp.float32, -bound, bound)


def _gcn_ref(seq, adj, weight, bias, alpha):
    # Plain-JAX reference of the torch forward (dense / sparse=False path).
    hi = jax.lax.Precision.HIGHEST
    seq_fts = jnp.einsum("bnd,od->bno", seq, weight, precision=hi)
    out = jnp.einsum("bnm,bmo->bno", adj, seq_fts, precision=hi) + bias
    return jnp.where(out >= 0, out, alpha * out)


if __name__ == "__main__":
    key = jax.random.PRNGKey(0)
    k_seq, k_adj, k_w, k_seq2, k_adj2, k_w2, k_b2 = jax.random.split(key, 7)

    alpha = jnp.float32(0.25)  # nn.PReLU default init

    # ---- Test 1: small graph, module-faithful init (bias = 0), f32 path ----
    B, N, D_in, D_out = 2, 8, 32, 32
    seq = jax.random.normal(k_seq, (B, N, D_in), jnp.float32)
    adj = jax.random.uniform(k_adj, (B, N, N), jnp.float32)
    weight = _xavier_uniform(k_w, D_out, D_in)   # nn.Linear(in, out, bias=False)
    bias = jnp.zeros((D_out,), jnp.float32)      # self.bias filled with 0.0

    ref = _gcn_ref(seq, adj, weight, bias, alpha)
    out_f32 = jax.block_until_ready(
        gcn_forward(seq, adj, weight, bias, alpha, compute_dtype=jnp.float32))
    assert out_f32.shape == ref.shape
    assert jnp.allclose(out_f32, ref, atol=1e-4, rtol=1e-4)

    # ---- Test 2: default bf16 MXU-input path (f32 accumulation) ------------
    out_bf16 = jax.block_until_ready(gcn_forward(seq, adj, weight, bias, alpha))
    assert jnp.allclose(out_bf16, ref, atol=1e-1, rtol=1e-1)

    # ---- Test 3: unaligned shapes, multiple partial row tiles, nonzero bias --
    B2, N2, Din2, Dout2 = 3, 20, 48, 40
    seq2 = jax.random.normal(k_seq2, (B2, N2, Din2), jnp.float32)
    adj2 = jax.random.uniform(k_adj2, (B2, N2, N2), jnp.float32)
    w2 = _xavier_uniform(k_w2, Dout2, Din2)
    b2 = 0.1 * jax.random.normal(k_b2, (Dout2,), jnp.float32)
    ref2 = _gcn_ref(seq2, adj2, w2, b2, alpha)
    out2 = jax.block_until_ready(
        gcn_forward(seq2, adj2, w2, b2, alpha, tm_target=16,
                    compute_dtype=jnp.float32))
    assert jnp.allclose(out2, ref2, atol=1e-4, rtol=1e-4)

    # ---- Test 4: same unaligned shapes on the default bf16 path ------------
    out2b = jax.block_until_ready(
        gcn_forward(seq2, adj2, w2, b2, alpha, tm_target=16))
    assert jnp.allclose(out2b, ref2, atol=1e-1, rtol=1e-1)

    print("KERNEL_OK")
</pallas_src>

<mosaic_0001>
module attributes {stable_mosaic.version = 11 : i64} {
  func.func @linear_kernel(%arg0: i32, %arg1: i32, %arg2: memref<1x8x32xf32, #tpu.memory_space<vmem>>, %arg3: memref<32x128xf32, #tpu.memory_space<vmem>>, %arg4: memref<1x8x128xf32, #tpu.memory_space<vmem>>) attributes {dimension_semantics = [#tpu.dimension_semantics<parallel>, #tpu.dimension_semantics<parallel>], iteration_bounds = array<i64: 2, 1>, scalar_prefetch = 0 : i64, scratch_operands = 0 : i64, tpu.core_type = #tpu.core_type<tc>, window_params = [{transform_indices = @transform_0, window_bounds = array<i64: 1, 8, 32>}, {pipeline_mode = #tpu.pipeline_mode<synchronous>, transform_indices = @transform_1, window_bounds = array<i64: 32, 128>}, {transform_indices = @transform_2, window_bounds = array<i64: 1, 8, 128>}]} {
    %c0 = arith.constant 0 : index
    %c0_0 = arith.constant 0 : index
    %c0_1 = arith.constant 0 : index
    %0 = vector.load %arg2[%c0, %c0_0, %c0_1] : memref<1x8x32xf32, #tpu.memory_space<vmem>>, vector<1x8x32xf32>
    %1 = vector.shape_cast %0 : vector<1x8x32xf32> to vector<8x32xf32>
    %c0_2 = arith.constant 0 : index
    %c0_3 = arith.constant 0 : index
    %2 = vector.load %arg3[%c0_2, %c0_3] : memref<32x128xf32, #tpu.memory_space<vmem>>, vector<32x128xf32>
    %cst = arith.constant dense<0.000000e+00> : vector<8x128xf32>
    %3 = tpu.matmul %1, %2, %cst {dimension_numbers = #tpu.dot_dimension_numbers<[1], [0], [0], [1], [0, 0, 1, 1], [], []>} : vector<8x32xf32>, vector<32x128xf32>, vector<8x128xf32> -> vector<8x128xf32>
    %c0_4 = arith.constant 0 : index
    %c0_5 = arith.constant 0 : index
    %c0_6 = arith.constant 0 : index
    %4 = vector.load %arg4[%c0_4, %c0_5, %c0_6] : memref<1x8x128xf32, #tpu.memory_space<vmem>>, vector<1x8x128xf32>
    %5 = vector.shape_cast %4 : vector<1x8x128xf32> to vector<8x128xf32>
    %6 = vector.shape_cast %3 : vector<8x128xf32> to vector<1x8x128xf32>
    tpu.vector_store %arg4[%c0_4, %c0_5, %c0_6], %6 {strides = array<i32>} : memref<1x8x128xf32, #tpu.memory_space<vmem>>, vector<1x8x128xf32>,
    return
  }
  func.func @transform_0(%arg0: i32, %arg1: i32) -> (i32, i32, i32) {
    %c0_i32 = arith.constant 0 : i32
    %c0_i32_0 = arith.constant 0 : i32
    return %arg0, %arg1, %c0_i32 : i32, i32, i32
  }
  func.func @transform_1(%arg0: i32, %arg1: i32) -> (i32, i32) {
    %c0_i32 = arith.constant 0 : i32
    %c0_i32_0 = arith.constant 0 : i32
    %c0_i32_1 = arith.constant 0 : i32
    return %c0_i32, %c0_i32_0 : i32, i32
  }
  func.func @transform_2(%arg0: i32, %arg1: i32) -> (i32, i32, i32) {
    %c0_i32 = arith.constant 0 : i32
    %c0_i32_0 = arith.constant 0 : i32
    return %arg0, %arg1, %c0_i32 : i32, i32, i32
  }
}

module attributes {stable_mosaic.version = 11 : i64} {
  func.func @propagate_kernel(%arg0: i32, %arg1: i32, %arg2: memref<1x1xf32, #tpu.memory_space<smem>>, %arg3: memref<1x8x8xf32, #tpu.memory_space<vmem>>, %arg4: memref<1x8x128xf32, #tpu.memory_space<vmem>>, %arg5: memref<1x128xf32, #tpu.memory_space<vmem>>, %arg6: memref<1x8x128xf32, #tpu.memory_space<vmem>>) attributes {dimension_semantics = [#tpu.dimension_semantics<parallel>, #tpu.dimension_semantics<parallel>], iteration_bounds = array<i64: 2, 1>, scalar_prefetch = 0 : i64, scratch_operands = 0 : i64, tpu.core_type = #tpu.core_type<tc>, window_params = [{transform_indices = @transform_0, window_bounds = array<i64: 1, 1>}, {transform_indices = @transform_1, window_bounds = array<i64: 1, 8, 8>}, {transform_indices = @transform_2, window_bounds = array<i64: 1, 8, 128>}, {pipeline_mode = #tpu.pipeline_mode<synchronous>, transform_indices = @transform_3, window_bounds = array<i64: 1, 128>}, {transform_indices = @transform_4, window_bounds = array<i64: 1, 8, 128>}]} {
    %c0 = arith.constant 0 : index
    %c0_0 = arith.constant 0 : index
    %c0_1 = arith.constant 0 : index
    %0 = vector.load %arg3[%c0, %c0_0, %c0_1] : memref<1x8x8xf32, #tpu.memory_space<vmem>>, vector<1x8x8xf32>
    %1 = vector.shape_cast %0 : vector<1x8x8xf32> to vector<8x8xf32>
    %c0_2 = arith.constant 0 : index
    %c0_3 = arith.constant 0 : index
    %c0_4 = arith.constant 0 : index
    %2 = vector.load %arg4[%c0_2, %c0_3, %c0_4] : memref<1x8x128xf32, #tpu.memory_space<vmem>>, vector<1x8x128xf32>
    %3 = vector.shape_cast %2 : vector<1x8x128xf32> to vector<8x128xf32>
    %cst = arith.constant dense<0.000000e+00> : vector<8x128xf32>
    %4 = tpu.matmul %1, %3, %cst {dimension_numbers = #tpu.dot_dimension_numbers<[1], [0], [0], [1], [0, 0, 1, 1], [], []>} : vector<8x8xf32>, vector<8x128xf32>, vector<8x128xf32> -> vector<8x128xf32>
    %c0_5 = arith.constant 0 : index
    %c0_6 = arith.constant 0 : index
    %5 = vector.load %arg5[%c0_5, %c0_6] : memref<1x128xf32, #tpu.memory_space<vmem>>, vector<1x128xf32>
    %6 = vector.broadcast %5 : vector<1x128xf32> to vector<8x128xf32>
    %7 = arith.addf %4, %6 : vector<8x128xf32>
    %c0_7 = arith.constant 0 : index
    %c0_8 = arith.constant 0 : index
    %8 = memref.load %arg2[%c0_7, %c0_8] : memref<1x1xf32, #tpu.memory_space<smem>>
    %cst_9 = arith.constant 0.000000e+00 : f32
    %9 = vector.broadcast %cst_9 : f32 to vector<8x128xf32>
    %10 = arith.cmpf oge, %7, %9 : vector<8x128xf32>
    %11 = vector.broadcast %8 : f32 to vector<8x128xf32>
    %12 = arith.mulf %11, %7 : vector<8x128xf32>
    %13 = arith.select %10, %7, %12 : vector<8x128xi1>, vector<8x128xf32>
    %c0_10 = arith.constant 0 : index
    %c0_11 = arith.constant 0 : index
    %c0_12 = arith.constant 0 : index
    %14 = vector.load %arg6[%c0_10, %c0_11, %c0_12] : memref<1x8x128xf32, #tpu.memory_space<vmem>>, vector<1x8x128xf32>
    %15 = vector.shape_cast %14 : vector<1x8x128xf32> to vector<8x128xf32>
    %16 = vector.shape_cast %13 : vector<8x128xf32> to vector<1x8x128xf32>
    tpu.vector_store %arg6[%c0_10, %c0_11, %c0_12], %16 {strides = array<i32>} : memref<1x8x128xf32, #tpu.memory_space<vmem>>, vector<1x8x128xf32>,
    return
  }
  func.func @transform_0(%arg0: i32, %arg1: i32) -> (i32, i32) {
    %c0_i32 = arith.constant 0 : i32
    %c0_i32_0 = arith.constant 0 : i32
    %c0_i32_1 = arith.constant 0 : i32
    return %c0_i32, %c0_i32_0 : i32, i32
  }
  func.func @transform_1(%arg0: i32, %arg1: i32) -> (i32, i32, i32) {
    %c0_i32 = arith.constant 0 : i32
    %c0_i32_0 = arith.constant 0 : i32
    return %arg0, %arg1, %c0_i32 : i32, i32, i32
  }
  func.func @transform_2(%arg0: i32, %arg1: i32) -> (i32, i32, i32) {
    %c0_i32 = arith.constant 0 : i32
    %c0_i32_0 = arith.constant 0 : i32
    %c0_i32_1 = arith.constant 0 : i32
    return %arg0, %c0_i32, %c0_i32_0 : i32, i32, i32
  }
  func.func @transform_3(%arg0: i32, %arg1: i32) -> (i32, i32) {
    %c0_i32 = arith.constant 0 : i32
    %c0_i32_0 = arith.constant 0 : i32
    %c0_i32_1 = arith.constant 0 : i32
    return %c0_i32, %c0_i32_0 : i32, i32
  }
  func.func @transform_4(%arg0: i32, %arg1: i32) -> (i32, i32, i32) {
    %c0_i32 = arith.constant 0 : i32
    %c0_i32_0 = arith.constant 0 : i32
    return %arg0, %arg1, %c0_i32 : i32, i32, i32
  }
}

</mosaic_0001>

<llo_original>
// kernel: gcn_forward.3
$region0: #{gcn_forward.3}
  #allocation0 [shape = 'u32[]', space=smem, size = 0x4, offset = 0x4, fixed_abs, tag = 'smem constant byte address 0x4 - core index']
  #allocation1 [shape = 'u32[144,128]{1,0:T(1,128)}', space=vmem, size = 0x12000, scoped, tag = 'internal scratch']
  #allocation2 [shape = 'f32[1,1]{1,0:T(1,128)S(6)}', space=smem, size = 0x200, scoped, tag = 'scoped memory for gcn_forward.3']
  %s0 = inlined_call_operand.<no memory space> [shape: f32[1,1], index: 0, kind: input, shape index: {}]
  %s1 = inlined_call_operand.vmem [shape: f32[2,8,8], index: 1, kind: input, shape index: {}]
  %s2 = inlined_call_operand.vmem [shape: f32[2,8,128], index: 2, kind: input, shape index: {}]
  %s3 = inlined_call_operand.vmem [shape: f32[1,128], index: 3, kind: input, shape index: {}]
  %s4 = inlined_call_operand.hbm [shape: f32[2,8,128], index: 4, kind: output, shape index: {}]
  %s5 = sld [smem:[#allocation0]]
  $region49: #{gcn_forward.3} parent=0
    _
  %s7 = ssub.s32 1, %s5
  %s8 = scalar_select 0, %s7, %s5
  %9 = sst [smem:[#allocation2]] %s0
  $region1: #{gcn_forward.3} parent=0
    #allocation3 [shape = 'u8[8192]{0}', space=vmem, size = 0x2000, scoped, tag = 'output window, operand 0']
    #allocation4 [shape = 's32[2]{0}', space=sflag, size = 0x8, scoped, tag = 'scoped memory for gcn_forward.3']
    %10 = vsyncpa [#allocation4], 0
    %s11 = scalar_lea.sflag [#allocation4], 1
    %12 = vsyncpa %s11, 0
    loop: start=0, step=1, limit=4
    $region2: #{gcn_forward.3} parent=1 // loop_pre_header
      _
    $region3: #{gcn_forward.3} parent=1 // loop_header
      %s14 = sphi 0, %s18
      %p15 = scmp.ge.s32.totalorder %s14, 4
      %s21 = sphi 0, %s33
      %s22 = sphi 0, %s29
      %s23 = sphi 0, %s21
      %s24 = sphi 0, %s22
      %s25 = sphi 0, %s23
      %s26 = sphi 0, %s24
      %s34 = sphi 0, %s34
      %s36 = sphi 0, %s34
      %s37 = sphi 0, %s36
      %s51 = sphi 0, %s37
      %s59 = sphi 0, %s61
      %s62 = sphi 0, %s59
      %s63 = sphi 0, %s62
      %s79 = sphi 0, %s63
      %s85 = sphi 0, %s87
      %s88 = sphi 0, %s85
      %s89 = sphi 0, %s88
      %s105 = sphi 0, %s89
      %s109 = sphi 0, %s109
      %s111 = sphi 0, %s109
      %s112 = sphi 0, %s111
      %s126 = sphi 0, %s112
      %s134 = sphi 0, %s136
      %s137 = sphi 0, %s134
      %s138 = sphi 0, %s137
      %s154 = sphi 0, %s138
    $region4: #{gcn_forward.3} parent=1 // loop_header_branch
      %17 = sbr.rel (%p15) target = $region8
    $region5: #{gcn_forward.3} parent=1 // loop_body
      %s19 = ssub.s32 %s14, 1
      %s20 = ssub.s32 %s14, 2
      %s27 = sadd.s32 1, %s22
      %p28 = scmp.ge.s32.totalorder %s27, 1
      %s29 = scalar_select %p28, 0, %s27
      %s30 = sadd.s32 1, %s21
      %s31 = scalar_select %p28, %s30, %s21
      %p32 = scmp.ge.s32.totalorder %s31, 2
      %s33 = scalar_select %p32, 0, %s31
      %s35 = sadd.s32 %s34, 1
      %p38 = scmp.eq.s32.totalorder %s14, 1
      %p39 = scmp.ne.s32.totalorder %s34, %s36
      %p40 = scmp.eq.s32.totalorder %s14, 0
      %p41 = por %p39, %p40
      %p42 = scmp.ne.s32.totalorder %s34, %s36
      %p43 = scmp.eq.s32.totalorder %s19, 1
      %p44 = por %p42, %p43
      %p45 = scmp.ne.s32.totalorder %s36, %s37
      %p46 = scmp.eq.s32.totalorder %s19, 0
      %p47 = por %p45, %p46
      %p48 = scmp.ne.s32.totalorder %s36, %s37
      %p49 = scmp.eq.s32.totalorder %s20, 1
      %p50 = por %p48, %p49
      %p52 = scmp.ne.s32.totalorder %s37, %s51
      %p53 = scmp.eq.s32.totalorder %s20, 0
      %p54 = por %p52, %p53
      %s55 = ssub.s32 %s21, %s33
      %s56 = ssub.s32 %s22, %s29
      %s57 = sor.u32 %s55, %s56
      %p58 = scmp.eq.s32.totalorder %s57, 0
      %s60 = sadd.s32 %s59, 1
      %s61 = scalar_select %p58, %s59, %s60
      %p64 = pneg %p58
      %p65 = scmp.eq.s32.totalorder %s14, 1
      %p66 = por %p64, %p65
      %p67 = scmp.ne.s32.totalorder %s59, %s62
      %p68 = scmp.eq.s32.totalorder %s14, 0
      %p69 = por %p67, %p68
      %p70 = scmp.ne.s32.totalorder %s59, %s62
      %p71 = scmp.eq.s32.totalorder %s19, 1
      %p72 = por %p70, %p71
      %p73 = scmp.ne.s32.totalorder %s62, %s63
      %p74 = scmp.eq.s32.totalorder %s19, 0
      %p75 = por %p73, %p74
      %p76 = scmp.ne.s32.totalorder %s62, %s63
      %p77 = scmp.eq.s32.totalorder %s20, 1
      %p78 = por %p76, %p77
      %p80 = scmp.ne.s32.totalorder %s63, %s79
      %p81 = scmp.eq.s32.totalorder %s20, 0
      %p82 = por %p80, %p81
      %s83 = ssub.s32 %s21, %s33
      %p84 = scmp.eq.s32.totalorder %s83, 0
      %s86 = sadd.s32 %s85, 1
      %s87 = scalar_select %p84, %s85, %s86
      %p90 = pneg %p84
      %p91 = scmp.eq.s32.totalorder %s14, 1
      %p92 = por %p90, %p91
      %p93 = scmp.ne.s32.totalorder %s85, %s88
      %p94 = scmp.eq.s32.totalorder %s14, 0
      %p95 = por %p93, %p94
      %p96 = scmp.ne.s32.totalorder %s85, %s88
      %p97 = scmp.eq.s32.totalorder %s19, 1
      %p98 = por %p96, %p97
      %p99 = scmp.ne.s32.totalorder %s88, %s89
      %p100 = scmp.eq.s32.totalorder %s19, 0
      %p101 = por %p99, %p100
      %p102 = scmp.ne.s32.totalorder %s88, %s89
      %p103 = scmp.eq.s32.totalorder %s20, 1
      %p104 = por %p102, %p103
      %p106 = scmp.ne.s32.totalorder %s89, %s105
      %p107 = scmp.eq.s32.totalorder %s20, 0
      %p108 = por %p106, %p107
      %s110 = sadd.s32 %s109, 1
      %p113 = scmp.eq.s32.totalorder %s14, 1
      %p114 = scmp.ne.s32.totalorder %s109, %s111
      %p115 = scmp.eq.s32.totalorder %s14, 0
      %p116 = por %p114, %p115
      %p117 = scmp.ne.s32.totalorder %s109, %s111
      %p118 = scmp.eq.s32.totalorder %s19, 1
      %p119 = por %p117, %p118
      %p120 = scmp.ne.s32.totalorder %s111, %s112
      %p121 = scmp.eq.s32.totalorder %s19, 0
      %p122 = por %p120, %p121
      %p123 = scmp.ne.s32.totalorder %s111, %s112
      %p124 = scmp.eq.s32.totalorder %s20, 1
      %p125 = por %p123, %p124
      %p127 = scmp.ne.s32.totalorder %s112, %s126
      %p128 = scmp.eq.s32.totalorder %s20, 0
      %p129 = por %p127, %p128
      %s130 = ssub.s32 %s21, %s33
      %s131 = ssub.s32 %s22, %s29
      %s132 = sor.u32 %s130, %s131
      %p133 = scmp.eq.s32.totalorder %s132, 0
      %s135 = sadd.s32 %s134, 1
      %s136 = scalar_select %p133, %s134, %s135
      %p139 = pneg %p133
      %p140 = scmp.eq.s32.totalorder %s14, 1
      %p141 = por %p139, %p140
      %p142 = scmp.ne.s32.totalorder %s134, %s137
      %p143 = scmp.eq.s32.totalorder %s14, 0
      %p144 = por %p142, %p143
      %p145 = scmp.ne.s32.totalorder %s134, %s137
      %p146 = scmp.eq.s32.totalorder %s19, 1
      %p147 = por %p145, %p146
      %p148 = scmp.ne.s32.totalorder %s137, %s138
      %p149 = scmp.eq.s32.totalorder %s19, 0
      %p150 = por %p148, %p149
      %p151 = scmp.ne.s32.totalorder %s137, %s138
      %p152 = scmp.eq.s32.totalorder %s20, 1
      %p153 = por %p151, %p152
      %p155 = scmp.ne.s32.totalorder %s138, %s154
      %p156 = scmp.eq.s32.totalorder %s20, 0
      %p157 = por %p155, %p156
      %p158 = scmp.le.s32.totalorder 1, %s14
      %p159 = scmp.lt.s32.totalorder %s14, 3
      %p160 = pnand %p158, %p159
      %p161 = pneg %p160
      // Predicated region
      $region9: #{gcn_forward.3} parent=5 // pred_check
        _
      $region10: #{gcn_forward.3} parent=5 // pred_check_branch
        %163 = sbr.rel (%p160) target = $region12
      $region11: #{gcn_forward.3} parent=5 // pred_region
        %s164 = ssub.s32 %s14, 1
        // Predicated region
        $region13: #{gcn_forward.3} parent=11 // pred_check
          %p165 = pneg %p47
        $region14: #{gcn_forward.3} parent=11 // pred_check_branch
          %167 = sbr.rel (%p165) target = $region16
        $region15: #{gcn_forward.3} parent=11 // pred_region
          _
        $region16: #{gcn_forward.3} parent=11 // pred_fallthru
          _
        // Predicated region
        $region17: #{gcn_forward.3} parent=11 // pred_check
          %p168 = pneg %p122
        $region18: #{gcn_forward.3} parent=11 // pred_check_branch
          %170 = sbr.rel (%p168) target = $region20
        $region19: #{gcn_forward.3} parent=11 // pred_region
          _
        $region20: #{gcn_forward.3} parent=11 // pred_fallthru
          _
      $region12: #{gcn_forward.3} parent=5 // pred_fallthru
        _
      %p171 = scmp.lt.s32.totalorder %s14, 2
      // Predicated region
      $region21: #{gcn_forward.3} parent=5 // pred_check
        %p172 = pneg %p171
      $region22: #{gcn_forward.3} parent=5 // pred_check_branch
        %174 = sbr.rel (%p172) target = $region24
      $region23: #{gcn_forward.3} parent=5 // pred_region
        // Predicated region
        $region25: #{gcn_forward.3} parent=23 // pred_check
          %p175 = pneg %p69
        $region26: #{gcn_forward.3} parent=23 // pred_check_branch
          %177 = sbr.rel (%p175) target = $region28
        $region27: #{gcn_forward.3} parent=23 // pred_region
          %p178 = scmp.lt.s32.totalorder %s21, 1
          %s179 = scalar_select %p178, %s21, 1
          %p180 = scmp.lt.s32.totalorder %s22, 0
          %s181 = scalar_select %p180, %s22, 0
          %s182 = sadd.s32 %s181, %s179
          %s183 = smul.addr %s182, 8
          %s184 = scalar_lea.vmem %s1, %s183
        $region28: #{gcn_forward.3} parent=23 // pred_fallthru
          _
        // Predicated region
        $region29: #{gcn_forward.3} parent=23 // pred_check
          %p185 = pneg %p95
        $region30: #{gcn_forward.3} parent=23 // pred_check_branch
          %187 = sbr.rel (%p185) target = $region32
        $region31: #{gcn_forward.3} parent=23 // pred_region
          %p188 = scmp.lt.s32.totalorder %s21, 1
          %s189 = scalar_select %p188, %s21, 1
          %s190 = smul.addr %s189, 8
          %s191 = scalar_lea.vmem %s2, %s190
        $region32: #{gcn_forward.3} parent=23 // pred_fallthru
          _
      $region24: #{gcn_forward.3} parent=5 // pred_fallthru
        _
      %p192 = scmp.le.s32.totalorder 1, %s14
      %p193 = scmp.lt.s32.totalorder %s14, 3
      %p194 = pnand %p192, %p193
      %p195 = pneg %p194
      // Predicated region
      $region33: #{gcn_forward.3} parent=5 // pred_check
        _
      $region34: #{gcn_forward.3} parent=5 // pred_check_branch
        %197 = sbr.rel (%p194) target = $region36
      $region35: #{gcn_forward.3} parent=5 // pred_region
        %s198 = ssub.s32 %s14, 1
        %p199 = pneg %p47
        %p200 = pneg %p44
        %p201 = scmp.lt.s32.totalorder %s23, 1
        %s202 = scalar_select %p201, %s23, 1
        %p203 = scmp.lt.s32.totalorder %s24, 0
        %s204 = scalar_select %p203, %s24, 0
        %s205 = sadd.s32 %s204, %s202
        %s206 = smul.addr %s205, 8
        %s207 = scalar_lea.vmem %s1, %s206
        %p208 = pneg %p75
        %p209 = pneg %p72
        %p210 = scmp.lt.s32.totalorder %s23, 1
        %s211 = scalar_select %p210, %s23, 1
        %s212 = smul.addr %s211, 8
        %s213 = scalar_lea.vmem %s2, %s212
        %p214 = pneg %p101
        %p215 = pneg %p98
        %p216 = pneg %p122
        %p217 = pneg %p119
        %p218 = pneg %p150
        %p219 = pneg %p147
        %s220 = sand.u32 %s137, 1
        %s221 = scalar_lea.sflag [#allocation4], %s220
        %s222 = sand.u32 %s137, 1
        %s223 = smul.addr %s222, 8
        %s224 = scalar_lea.vmem [#allocation3], %s223
        %p225 = scmp.lt.s32.totalorder %s23, 1
        %s226 = scalar_select %p225, %s23, 1
        %p227 = scmp.lt.s32.totalorder %s24, 0
        %s228 = scalar_select %p227, %s24, 0
        %s229 = sadd.s32 %s228, %s226
        %s230 = smul.addr %s229, 8
        %s231 = scalar_lea.vmem %s1, %s230
        %p232 = scmp.lt.s32.totalorder %s23, 1
        %s233 = scalar_select %p232, %s23, 1
        %s234 = smul.addr %s233, 8
        %s235 = scalar_lea.vmem %s2, %s234
        %v236 = vld [vmem:[%s231] sm:$0xff]
        %v237 = vld [vmem:[%s235] sm:$0xff]
        %v238 = vld [vmem:[%s3] sm:$0x1]
        %v240 = vlaneseq
        %v241 = vshrl.u32 %v240, 7
        %v242 = vsub.s32 0, %v241
        %v243 = vrot.slane %v238, %v242
        %vm245 = vcmask 64512
        %v247 = vsel %vm245, %v236, 0
        %249 = vmatprep.subr.mxu0 0.0
        %250 = vmatpush1.msra.mxu0 %v237
        %251 = vmatprep.subr.mxu0 0.0
        %252 = vmatpush1.msra.mxu0 0.0
        %253 = vmatprep.subr.mxu0 0.0
        %254 = vmatpush1.msra.mxu0 0.0
        %255 = vmatprep.subr.mxu0 0.0
        %256 = vmatpush1.msra.mxu0 0.0
        %257 = vmatprep.subr.mxu0 0.0
        %258 = vmatpush1.msra.mxu0 0.0
        %259 = vmatprep.subr.mxu0 0.0
        %260 = vmatpush1.msra.mxu0 0.0
        %261 = vmatprep.subr.mxu0 0.0
        %262 = vmatpush1.msra.mxu0 0.0
        %263 = vmatprep.subr.mxu0 0.0
        %264 = vmatpush1.msra.mxu0 0.0
        %265 = vmatprep.subr.mxu0 0.0
        %266 = vmatpush1.msra.mxu0 0.0
        %267 = vmatprep.subr.mxu0 0.0
        %268 = vmatpush1.msra.mxu0 0.0
        %269 = vmatprep.subr.mxu0 0.0
        %270 = vmatpush1.msra.mxu0 0.0
        %271 = vmatprep.subr.mxu0 0.0
        %272 = vmatpush1.msra.mxu0 0.0
        %273 = vmatprep.subr.mxu0 0.0
        %274 = vmatpush1.msra.mxu0 0.0
        %275 = vmatprep.subr.mxu0 0.0
        %276 = vmatpush1.msra.mxu0 0.0
        %277 = vmatprep.subr.mxu0 0.0
        %278 = vmatpush1.msra.mxu0 0.0
        %279 = vmatprep.subr.mxu0 0.0
        %280 = vmatpush1.msra.mxu0 0.0
        %281 = vmatprep.subr.mxu0 0.0
        %282 = vmatpush1.msra.mxu0 0.0
        %283 = vmatprep.subr.mxu0 0.0
        %284 = vmatpush1.msra.mxu0 0.0
        %285 = vmatprep.subr.mxu0 0.0
        %286 = vmatpush1.msra.mxu0 0.0
        %287 = vmatprep.subr.mxu0 0.0
        %288 = vmatpush1.msra.mxu0 0.0
        %289 = vmatprep.subr.mxu0 0.0
        %290 = vmatpush1.msra.mxu0 0.0
        %291 = vmatprep.subr.mxu0 0.0
        %292 = vmatpush1.msra.mxu0 0.0
        %293 = vmatprep.subr.mxu0 0.0
        %294 = vmatpush1.msra.mxu0 0.0
        %295 = vmatprep.subr.mxu0 0.0
        %296 = vmatpush1.msra.mxu0 0.0
        %297 = vmatprep.subr.mxu0 0.0
        %298 = vmatpush1.msra.mxu0 0.0
        %299 = vmatprep.subr.mxu0 0.0
        %300 = vmatpush1.msra.mxu0 0.0
        %301 = vmatprep.subr.mxu0 0.0
        %302 = vmatpush1.msra.mxu0 0.0
        %303 = vmatprep.subr.mxu0 0.0
        %304 = vmatpush1.msra.mxu0 0.0
        %305 = vmatprep.subr.mxu0 0.0
        %306 = vmatpush1.msra.mxu0 0.0
        %307 = vmatprep.subr.mxu0 0.0
        %308 = vmatpush1.msra.mxu0 0.0
        %309 = vmatprep.subr.mxu0 0.0
        %310 = vmatpush1.msra.mxu0 0.0
        %311 = vmatprep.subr.mxu0 0.0
        %312 = vmatpush1.msra.mxu0 0.0
        %313 = vmatprep.mubr.f32.mxu0 0.0
        %314 = vmatmul.mubr.f32.gmra.mrb[0].mxu0 %v247
        %v315 = vpop.f32.mrb[0].mxu0
        %v316 = vadd.f32 %v243, %v315
        %v317 = vpop.f32.mrb[0].mxu0
        %318 = vdwg.mxu0
        %s319 = sld [smem:[#allocation2]]
        %vm320 = vcmp.ge.f32.partialorder %v316, 0.0
        %v321 = vstv %s319
        %v322 = vmul.f32 %v321, %v316
        %v323 = vsel %vm320, %v316, %v322
        %324 = vst [vmem:[%s224] sm:$0xff] %v323
        %s325 = sand.u32 %s137, 1
        %s326 = scalar_lea.sflag [#allocation4], %s325
        %s327 = sand.u32 %s137, 1
        %s328 = smul.addr %s327, 8
        %s329 = scalar_lea.vmem [#allocation3], %s328
        // Predicated region
        $region37: #{gcn_forward.3} parent=35 // pred_check
          %p330 = pneg %p147
        $region38: #{gcn_forward.3} parent=35 // pred_check_branch
          %332 = sbr.rel (%p330) target = $region40
        $region39: #{gcn_forward.3} parent=35 // pred_region
          %s334 = ssub.s32 128, 128
          %335 = vsyncadd %s326, %s334
          %s336 = sadd.s32 %s24, %s23
          %s337 = smul.addr %s336, 128
          %s338 = scalar_lea.hbm %s4, %s337
          %s340 = sshll.u32 %s329, 4
          %s341 = int_to_ptr.vmem [resolvable:$true] %s340
          %343 = dma.vmem_to_hbm [thread:$0]  %s341, 128, %s338, %s326
        $region40: #{gcn_forward.3} parent=35 // pred_fallthru
          _
      $region36: #{gcn_forward.3} parent=5 // pred_fallthru
        _
      %p344 = scmp.le.s32.totalorder 2, %s14
      // Predicated region
      $region41: #{gcn_forward.3} parent=5 // pred_check
        %p345 = pneg %p344
      $region42: #{gcn_forward.3} parent=5 // pred_check_branch
        %347 = sbr.rel (%p345) target = $region44
      $region43: #{gcn_forward.3} parent=5 // pred_region
        %s348 = ssub.s32 %s14, 2
        // Predicated region
        $region45: #{gcn_forward.3} parent=43 // pred_check
          %p349 = pneg %p153
        $region46: #{gcn_forward.3} parent=43 // pred_check_branch
          %351 = sbr.rel (%p349) target = $region48
        $region47: #{gcn_forward.3} parent=43 // pred_region
          %s352 = sand.u32 %s138, 1
          %s353 = scalar_lea.sflag [#allocation4], %s352
          %s354 = sand.u32 %s138, 1
          %s355 = smul.addr %s354, 8
          %s356 = scalar_lea.vmem [#allocation3], %s355
          %357 = dma.done %s353, 128
        $region48: #{gcn_forward.3} parent=43 // pred_fallthru
          _
      $region44: #{gcn_forward.3} parent=5 // pred_fallthru
        _
    $region6: #{gcn_forward.3} parent=1 // loop_footer
      %s18 = sadd.s32 1, %s14
    $region7: #{gcn_forward.3} parent=1 // loop_footer_branch
      %13 = sbr.rel target = $region3
    $region8: #{gcn_forward.3} parent=1 // loop_exit
      _
    %358 = vsyncpa [#allocation4], 1
    %s359 = scalar_lea.sflag [#allocation4], 1
    %360 = vsyncpa %s359, 1

// kernel: gcn_forward.2
$region0: #{gcn_forward.2}
  #allocation0 [shape = 'u32[]', space=smem, size = 0x4, offset = 0x4, fixed_abs, tag = 'smem constant byte address 0x4 - core index']
  #allocation1 [shape = 'u32[144,128]{1,0:T(1,128)}', space=vmem, size = 0x12000, scoped, tag = 'internal scratch']
  %s0 = inlined_call_operand.vmem [shape: f32[2,8,32], index: 0, kind: input, shape index: {}]
  %s1 = inlined_call_operand.vmem [shape: f32[32,128], index: 1, kind: input, shape index: {}]
  %s2 = inlined_call_operand.vmem [shape: f32[2,8,128], index: 2, kind: output, shape index: {}]
  %s3 = sld [smem:[#allocation0]]
  $region41: #{gcn_forward.2} parent=0
    _
  %s5 = ssub.s32 1, %s3
  %s6 = scalar_select 0, %s5, %s3
  loop: start=0, step=1, limit=4
  $region2: #{gcn_forward.2} parent=0 // loop_pre_header
    _
  $region3: #{gcn_forward.2} parent=0 // loop_header
    %s8 = sphi 0, %s12
    %p9 = scmp.ge.s32.totalorder %s8, 4
    %s15 = sphi 0, %s27
    %s16 = sphi 0, %s23
    %s17 = sphi 0, %s15
    %s18 = sphi 0, %s16
    %s19 = sphi 0, %s17
    %s20 = sphi 0, %s18
    %s32 = sphi 0, %s34
    %s35 = sphi 0, %s32
    %s36 = sphi 0, %s35
    %s52 = sphi 0, %s36
    %s56 = sphi 0, %s56
    %s58 = sphi 0, %s56
    %s59 = sphi 0, %s58
    %s73 = sphi 0, %s59
    %s81 = sphi 0, %s83
    %s84 = sphi 0, %s81
    %s85 = sphi 0, %s84
    %s101 = sphi 0, %s85
  $region4: #{gcn_forward.2} parent=0 // loop_header_branch
    %11 = sbr.rel (%p9) target = $region8
  $region5: #{gcn_forward.2} parent=0 // loop_body
    %s13 = ssub.s32 %s8, 1
    %s14 = ssub.s32 %s8, 2
    %s21 = sadd.s32 1, %s16
    %p22 = scmp.ge.s32.totalorder %s21, 1
    %s23 = scalar_select %p22, 0, %s21
    %s24 = sadd.s32 1, %s15
    %s25 = scalar_select %p22, %s24, %s15
    %p26 = scmp.ge.s32.totalorder %s25, 2
    %s27 = scalar_select %p26, 0, %s25
    %s28 = ssub.s32 %s15, %s27
    %s29 = ssub.s32 %s16, %s23
    %s30 = sor.u32 %s28, %s29
    %p31 = scmp.eq.s32.totalorder %s30, 0
    %s33 = sadd.s32 %s32, 1
    %s34 = scalar_select %p31, %s32, %s33
    %p37 = pneg %p31
    %p38 = scmp.eq.s32.totalorder %s8, 1
    %p39 = por %p37, %p38
    %p40 = scmp.ne.s32.totalorder %s32, %s35
    %p41 = scmp.eq.s32.totalorder %s8, 0
    %p42 = por %p40, %p41
    %p43 = scmp.ne.s32.totalorder %s32, %s35
    %p44 = scmp.eq.s32.totalorder %s13, 1
    %p45 = por %p43, %p44
    %p46 = scmp.ne.s32.totalorder %s35, %s36
    %p47 = scmp.eq.s32.totalorder %s13, 0
    %p48 = por %p46, %p47
    %p49 = scmp.ne.s32.totalorder %s35, %s36
    %p50 = scmp.eq.s32.totalorder %s14, 1
    %p51 = por %p49, %p50
    %p53 = scmp.ne.s32.totalorder %s36, %s52
    %p54 = scmp.eq.s32.totalorder %s14, 0
    %p55 = por %p53, %p54
    %s57 = sadd.s32 %s56, 1
    %p60 = scmp.eq.s32.totalorder %s8, 1
    %p61 = scmp.ne.s32.totalorder %s56, %s58
    %p62 = scmp.eq.s32.totalorder %s8, 0
    %p63 = por %p61, %p62
    %p64 = scmp.ne.s32.totalorder %s56, %s58
    %p65 = scmp.eq.s32.totalorder %s13, 1
    %p66 = por %p64, %p65
    %p67 = scmp.ne.s32.totalorder %s58, %s59
    %p68 = scmp.eq.s32.totalorder %s13, 0
    %p69 = por %p67, %p68
    %p70 = scmp.ne.s32.totalorder %s58, %s59
    %p71 = scmp.eq.s32.totalorder %s14, 1
    %p72 = por %p70, %p71
    %p74 = scmp.ne.s32.totalorder %s59, %s73
    %p75 = scmp.eq.s32.totalorder %s14, 0
    %p76 = por %p74, %p75
    %s77 = ssub.s32 %s15, %s27
    %s78 = ssub.s32 %s16, %s23
    %s79 = sor.u32 %s77, %s78
    %p80 = scmp.eq.s32.totalorder %s79, 0
    %s82 = sadd.s32 %s81, 1
    %s83 = scalar_select %p80, %s81, %s82
    %p86 = pneg %p80
    %p87 = scmp.eq.s32.totalorder %s8, 1
    %p88 = por %p86, %p87
    %p89 = scmp.ne.s32.totalorder %s81, %s84
    %p90 = scmp.eq.s32.totalorder %s8, 0
    %p91 = por %p89, %p90
    %p92 = scmp.ne.s32.totalorder %s81, %s84
    %p93 = scmp.eq.s32.totalorder %s13, 1
    %p94 = por %p92, %p93
    %p95 = scmp.ne.s32.totalorder %s84, %s85
    %p96 = scmp.eq.s32.totalorder %s13, 0
    %p97 = por %p95, %p96
    %p98 = scmp.ne.s32.totalorder %s84, %s85
    %p99 = scmp.eq.s32.totalorder %s14, 1
    %p100 = por %p98, %p99
    %p102 = scmp.ne.s32.totalorder %s85, %s101
    %p103 = scmp.eq.s32.totalorder %s14, 0
    %p104 = por %p102, %p103
    %p105 = scmp.le.s32.totalorder 1, %s8
    %p106 = scmp.lt.s32.totalorder %s8, 3
    %p107 = pnand %p105, %p106
    %p108 = pneg %p107
    // Predicated region
    $region9: #{gcn_forward.2} parent=5 // pred_check
      _
    $region10: #{gcn_forward.2} parent=5 // pred_check_branch
      %110 = sbr.rel (%p107) target = $region12
    $region11: #{gcn_forward.2} parent=5 // pred_region
      %s111 = ssub.s32 %s8, 1
      // Predicated region
      $region13: #{gcn_forward.2} parent=11 // pred_check
        %p112 = pneg %p69
      $region14: #{gcn_forward.2} parent=11 // pred_check_branch
        %114 = sbr.rel (%p112) target = $region16
      $region15: #{gcn_forward.2} parent=11 // pred_region
        _
      $region16: #{gcn_forward.2} parent=11 // pred_fallthru
        _
    $region12: #{gcn_forward.2} parent=5 // pred_fallthru
      _
    %p115 = scmp.lt.s32.totalorder %s8, 2
    // Predicated region
    $region17: #{gcn_forward.2} parent=5 // pred_check
      %p116 = pneg %p115
    $region18: #{gcn_forward.2} parent=5 // pred_check_branch
      %118 = sbr.rel (%p116) target = $region20
    $region19: #{gcn_forward.2} parent=5 // pred_region
      // Predicated region
      $region21: #{gcn_forward.2} parent=19 // pred_check
        %p119 = pneg %p42
      $region22: #{gcn_forward.2} parent=19 // pred_check_branch
        %121 = sbr.rel (%p119) target = $region24
      $region23: #{gcn_forward.2} parent=19 // pred_region
        %p122 = scmp.lt.s32.totalorder %s15, 1
        %s123 = scalar_select %p122, %s15, 1
        %p124 = scmp.lt.s32.totalorder %s16, 0
        %s125 = scalar_select %p124, %s16, 0
        %s126 = sadd.s32 %s125, %s123
        %s127 = smul.addr %s126, 8
        %s128 = scalar_lea.vmem %s0, %s127
      $region24: #{gcn_forward.2} parent=19 // pred_fallthru
        _
    $region20: #{gcn_forward.2} parent=5 // pred_fallthru
      _
    %p129 = scmp.le.s32.totalorder 1, %s8
    %p130 = scmp.lt.s32.totalorder %s8, 3
    %p131 = pnand %p129, %p130
    %p132 = pneg %p131
    // Predicated region
    $region25: #{gcn_forward.2} parent=5 // pred_check
      _
    $region26: #{gcn_forward.2} parent=5 // pred_check_branch
      %134 = sbr.rel (%p131) target = $region28
    $region27: #{gcn_forward.2} parent=5 // pred_region
      %s135 = ssub.s32 %s8, 1
      %p136 = scmp.lt.s32.totalorder %s17, 1
      %s137 = scalar_select %p136, %s17, 1
      %p138 = scmp.lt.s32.totalorder %s18, 0
      %s139 = scalar_select %p138, %s18, 0
      %s140 = sadd.s32 %s139, %s137
      %s141 = smul.addr %s140, 8
      %s142 = scalar_lea.vmem %s0, %s141
      %p143 = pneg %p48
      %p144 = pneg %p45
      %p145 = pneg %p69
      %p146 = pneg %p66
      %p147 = pneg %p97
      %p148 = pneg %p94
      %p149 = scmp.lt.s32.totalorder %s17, 1
      %s150 = scalar_select %p149, %s17, 1
      %p151 = scmp.lt.s32.totalorder %s18, 0
      %s152 = scalar_select %p151, %s18, 0
      %s153 = sadd.s32 %s152, %s150
      %s154 = smul.addr %s153, 8
      %s155 = scalar_lea.vmem %s2, %s154
      %p156 = scmp.lt.s32.totalorder %s17, 1
      %s157 = scalar_select %p156, %s17, 1
      %p158 = scmp.lt.s32.totalorder %s18, 0
      %s159 = scalar_select %p158, %s18, 0
      %s160 = sadd.s32 %s159, %s157
      %s161 = smul.addr %s160, 8
      %s162 = scalar_lea.vmem %s0, %s161
      %p163 = scmp.lt.s32.totalorder %s17, 1
      %s164 = scalar_select %p163, %s17, 1
      %p165 = scmp.lt.s32.totalorder %s18, 0
      %s166 = scalar_select %p165, %s18, 0
      %s167 = sadd.s32 %s166, %s164
      %s168 = smul.addr %s167, 8
      %s169 = scalar_lea.vmem %s2, %s168
      %v170 = vld [vmem:[%s162] sm:$0xff]
      %v171 = vld [vmem:[%s1] sm:$0xff]
      %v172 = vld [vmem:[%s1 + $0x8] sm:$0xff]
      %v173 = vld [vmem:[%s1 + $0x10] sm:$0xff]
      %v174 = vld [vmem:[%s1 + $0x18] sm:$0xff]
      %vm175 = vcmask 261120
      %v177 = vsel %vm175, %v170, 0
      %179 = vmatprep.subr.mxu0 0.0
      %180 = vmatpush1.msra.mxu0 %v171
      %181 = vmatprep.subr.mxu0 0.0
      %182 = vmatpush1.msra.mxu0 %v172
      %183 = vmatprep.subr.mxu0 0.0
      %184 = vmatpush1.msra.mxu0 %v173
      %185 = vmatprep.subr.mxu0 0.0
      %186 = vmatpush1.msra.mxu0 %v174
      %187 = vmatprep.subr.mxu0 0.0
      %188 = vmatpush1.msra.mxu0 0.0
      %189 = vmatprep.subr.mxu0 0.0
      %190 = vmatpush1.msra.mxu0 0.0
      %191 = vmatprep.subr.mxu0 0.0
      %192 = vmatpush1.msra.mxu0 0.0
      %193 = vmatprep.subr.mxu0 0.0
      %194 = vmatpush1.msra.mxu0 0.0
      %195 = vmatprep.subr.mxu0 0.0
      %196 = vmatpush1.msra.mxu0 0.0
      %197 = vmatprep.subr.mxu0 0.0
      %198 = vmatpush1.msra.mxu0 0.0
      %199 = vmatprep.subr.mxu0 0.0
      %200 = vmatpush1.msra.mxu0 0.0
      %201 = vmatprep.subr.mxu0 0.0
      %202 = vmatpush1.msra.mxu0 0.0
      %203 = vmatprep.subr.mxu0 0.0
      %204 = vmatpush1.msra.mxu0 0.0
      %205 = vmatprep.subr.mxu0 0.0
      %206 = vmatpush1.msra.mxu0 0.0
      %207 = vmatprep.subr.mxu0 0.0
      %208 = vmatpush1.msra.mxu0 0.0
      %209 = vmatprep.subr.mxu0 0.0
      %210 = vmatpush1.msra.mxu0 0.0
      %211 = vmatprep.subr.mxu0 0.0
      %212 = vmatpush1.msra.mxu0 0.0
      %213 = vmatprep.subr.mxu0 0.0
      %214 = vmatpush1.msra.mxu0 0.0
      %215 = vmatprep.subr.mxu0 0.0
      %216 = vmatpush1.msra.mxu0 0.0
      %217 = vmatprep.subr.mxu0 0.0
      %218 = vmatpush1.msra.mxu0 0.0
      %219 = vmatprep.subr.mxu0 0.0
      %220 = vmatpush1.msra.mxu0 0.0
      %221 = vmatprep.subr.mxu0 0.0
      %222 = vmatpush1.msra.mxu0 0.0
      %223 = vmatprep.subr.mxu0 0.0
      %224 = vmatpush1.msra.mxu0 0.0
      %225 = vmatprep.subr.mxu0 0.0
      %226 = vmatpush1.msra.mxu0 0.0
      %227 = vmatprep.subr.mxu0 0.0
      %228 = vmatpush1.msra.mxu0 0.0
      %229 = vmatprep.subr.mxu0 0.0
      %230 = vmatpush1.msra.mxu0 0.0
      %231 = vmatprep.subr.mxu0 0.0
      %232 = vmatpush1.msra.mxu0 0.0
      %233 = vmatprep.subr.mxu0 0.0
      %234 = vmatpush1.msra.mxu0 0.0
      %235 = vmatprep.subr.mxu0 0.0
      %236 = vmatpush1.msra.mxu0 0.0
      %237 = vmatprep.subr.mxu0 0.0
      %238 = vmatpush1.msra.mxu0 0.0
      %239 = vmatprep.subr.mxu0 0.0
      %240 = vmatpush1.msra.mxu0 0.0
      %241 = vmatprep.subr.mxu0 0.0
      %242 = vmatpush1.msra.mxu0 0.0
      %243 = vmatprep.mubr.f32.mxu0 0.0
      %244 = vmatmul.mubr.f32.gmra.mrb[0].mxu0 %v177
      %v245 = vpop.f32.mrb[0].mxu0
      %v246 = vadd.f32 0.0, %v245
      %v247 = vpop.f32.mrb[0].mxu0
      %248 = vdwg.mxu0
      %249 = vst [vmem:[%s169] sm:$0xff] %v246
      %p250 = scmp.lt.s32.totalorder %s17, 1
      %s251 = scalar_select %p250, %s17, 1
      %p252 = scmp.lt.s32.totalorder %s18, 0
      %s253 = scalar_select %p252, %s18, 0
      %s254 = sadd.s32 %s253, %s251
      %s255 = smul.addr %s254, 8
      %s256 = scalar_lea.vmem %s2, %s255
      // Predicated region
      $region29: #{gcn_forward.2} parent=27 // pred_check
        %p257 = pneg %p94
      $region30: #{gcn_forward.2} parent=27 // pred_check_branch
        %259 = sbr.rel (%p257) target = $region32
      $region31: #{gcn_forward.2} parent=27 // pred_region
        _
      $region32: #{gcn_forward.2} parent=27 // pred_fallthru
        _
    $region28: #{gcn_forward.2} parent=5 // pred_fallthru
      _
    %p260 = scmp.le.s32.totalorder 2, %s8
    // Predicated region
    $region33: #{gcn_forward.2} parent=5 // pred_check
      %p261 = pneg %p260
    $region34: #{gcn_forward.2} parent=5 // pred_check_branch
      %263 = sbr.rel (%p261) target = $region36
    $region35: #{gcn_forward.2} parent=5 // pred_region
      %s264 = ssub.s32 %s8, 2
      // Predicated region
      $region37: #{gcn_forward.2} parent=35 // pred_check
        %p265 = pneg %p100
      $region38: #{gcn_forward.2} parent=35 // pred_check_branch
        %267 = sbr.rel (%p265) target = $region40
      $region39: #{gcn_forward.2} parent=35 // pred_region
        %p268 = scmp.lt.s32.totalorder %s19, 1
        %s269 = scalar_select %p268, %s19, 1
        %p270 = scmp.lt.s32.totalorder %s20, 0
        %s271 = scalar_select %p270, %s20, 0
        %s272 = sadd.s32 %s271, %s269
        %s273 = smul.addr %s272, 8
        %s274 = scalar_lea.vmem %s2, %s273
      $region40: #{gcn_forward.2} parent=35 // pred_fallthru
        _
    $region36: #{gcn_forward.2} parent=5 // pred_fallthru
      _
  $region6: #{gcn_forward.2} parent=0 // loop_footer
    %s12 = sadd.s32 1, %s8
  $region7: #{gcn_forward.2} parent=0 // loop_footer_branch
    %7 = sbr.rel target = $region3
  $region8: #{gcn_forward.2} parent=0 // loop_exit
    _

</llo_original>
